<compile_context>
chip_gen: v7x
topology: tpu7x:2x2x1
jax: 0.10.0
libtpu: 0.0.40
codegen_flags: <defaults>
</compile_context>

<pallas_src>
import functools

import jax
import jax.numpy as jnp
from jax.experimental import pallas as pl
from jax.experimental.pallas import tpu as pltpu

IN_FEATURES = 2      # linearSize: convForward is identity on (1, 2) -> 2
HIDDEN = 50
NUM_CLASSES = 2
HPAD = 64            # hidden axis padded to a multiple of 8 (lives on sublanes)
CPAD = 8             # class axis padded to 8 sublanes
WLANE = 128          # lane padding for the tiny fc1 input-feature axis of w1


def _net_kernel(x_ref, w1_ref, b1_ref, w2_ref, b2_ref, o_ref):
    # Batch-on-lanes layout (feature / hidden / class axes live on sublanes):
    #   x_ref:  (IN_FEATURES, TB)   streamed input block, fully lane-dense
    #   w1_ref: (HPAD, WLANE)       fc1 weight, (hidden, in) = torch fc1.weight, zero padded
    #   b1_ref: (HPAD, 1)           fc1 bias column
    #   w2_ref: (CPAD, HPAD)        fc2 weight, (class, hidden) = torch fc2.weight, zero padded
    #   b2_ref: (CPAD, 1)           fc2 bias column
    #   o_ref:  (NUM_CLASSES, TB)   log_softmax output block, fully lane-dense
    x0 = x_ref[0:1, :]                         # (1, TB) sublane-broadcast sources
    x1 = x_ref[1:2, :]

    # fc1 (K = 2): two VPU broadcast-FMAs (loop-invariant weight columns / x rows)
    # + bias, then ReLU.  Padded hidden rows are exactly zero.
    h = w1_ref[:, 0:1] * x0 + w1_ref[:, 1:2] * x1 + b1_ref[...]   # (HPAD, TB)
    h = jnp.maximum(h, 0.0)

    # TODO(synk): F.dropout(x, training=self.training) is identity in eval mode;
    # training-mode dropout (PRNG masking + 1/(1-p) scaling) is not implemented.

    # fc2 (N = 2) on the otherwise-idle MXU: (CPAD, HPAD) @ (HPAD, TB) -> (CPAD, TB).
    logits = jnp.dot(w2_ref[...], h, preferred_element_type=jnp.float32) + b2_ref[...]

    # 2-class log_softmax, closed form (numerically stable); classes on sublanes,
    # batch on lanes -> lane-dense exp/log/max/sub and a single dense store.
    l0 = logits[0:1, :]
    l1 = logits[1:2, :]
    m = jnp.maximum(l0, l1)
    lse = m + jnp.log(jnp.exp(l0 - m) + jnp.exp(l1 - m))
    o_ref[...] = logits[0:NUM_CLASSES, :] - lse


def pad_params(w1, b1, w2, b2):
    """Pad parameters ONCE (outside the per-call path) to TPU-friendly tiles.

    w1: (IN_FEATURES, HIDDEN), b1: (HIDDEN,), w2: (HIDDEN, NUM_CLASSES), b2: (NUM_CLASSES,)
    (w1/w2 are the transposes of torch's nn.Linear.weight.)
    """
    w1_p = jnp.zeros((HPAD, WLANE), jnp.float32).at[:HIDDEN, :IN_FEATURES].set(w1.T)
    b1_p = jnp.zeros((HPAD, 1), jnp.float32).at[:HIDDEN, 0].set(b1)
    w2_p = jnp.zeros((CPAD, HPAD), jnp.float32).at[:NUM_CLASSES, :HIDDEN].set(w2.T)
    b2_p = jnp.zeros((CPAD, 1), jnp.float32).at[:NUM_CLASSES, 0].set(b2)
    return w1_p, b1_p, w2_p, b2_p


def _round_up(n, m):
    return ((n + m - 1) // m) * m


@functools.partial(jax.jit, static_argnames=("block_b",))
def net_forward(x, w1_p, b1_p, w2_p, b2_p, *, block_b=2048):
    """x: (..., IN_FEATURES) float32; returns log_softmax logits (B, NUM_CLASSES)."""
    x2 = x.reshape(-1, IN_FEATURES)            # x.view(-1, linearSize)
    B = x2.shape[0]
    xt = x2.T                                  # batch on lanes: (IN_FEATURES, B)

    # Batch tile: multiple of 128 lanes; cap at ~ceil(B/2) so the grid has >= 2
    # steps when possible (v7x has 2 TensorCores; harmless on v5e/v6e).
    half = _round_up(-(-B // 2), 128)
    tb = max(128, min(block_b, half))
    b_pad = _round_up(B, tb)
    if b_pad != B:
        xt = jnp.pad(xt, ((0, 0), (0, b_pad - B)))
    nb = b_pad // tb

    out_t = pl.pallas_call(
        _net_kernel,
        out_shape=jax.ShapeDtypeStruct((NUM_CLASSES, b_pad), jnp.float32),
        grid=(nb,),
        in_specs=[
            pl.BlockSpec((IN_FEATURES, tb), lambda i: (0, i)),   # streamed, lane-dense
            pl.BlockSpec((HPAD, WLANE), lambda i: (0, 0)),       # VMEM-resident weights
            pl.BlockSpec((HPAD, 1), lambda i: (0, 0)),
            pl.BlockSpec((CPAD, HPAD), lambda i: (0, 0)),
            pl.BlockSpec((CPAD, 1), lambda i: (0, 0)),
        ],
        out_specs=pl.BlockSpec((NUM_CLASSES, tb), lambda i: (0, i)),
        compiler_params=pltpu.CompilerParams(
            dimension_semantics=("parallel",)),
    )(xt, w1_p, b1_p, w2_p, b2_p)

    out_t = out_t[:, :B] if b_pad != B else out_t
    return out_t.T                             # (B, NUM_CLASSES)


def init_params(key):
    """Deterministic PyTorch-style uniform(-1/sqrt(fan_in), 1/sqrt(fan_in))."""
    k1, k2, k3, k4 = jax.random.split(key, 4)
    bound1 = 1.0 / jnp.sqrt(IN_FEATURES)
    bound2 = 1.0 / jnp.sqrt(HIDDEN)
    # Stored as (in_features, out_features) so the reference computes x @ W + b.
    w1 = jax.random.uniform(k1, (IN_FEATURES, HIDDEN), jnp.float32, -bound1, bound1)
    b1 = jax.random.uniform(k2, (HIDDEN,), jnp.float32, -bound1, bound1)
    w2 = jax.random.uniform(k3, (HIDDEN, NUM_CLASSES), jnp.float32, -bound2, bound2)
    b2 = jax.random.uniform(k4, (NUM_CLASSES,), jnp.float32, -bound2, bound2)
    return w1, b1, w2, b2


if __name__ == "__main__":
    key = jax.random.PRNGKey(0)
    kx, kp = jax.random.split(key)

    B = 1024   # matches batch_size_test / batch_size_train in the spec
    x = jax.random.normal(kx, (B, IN_FEATURES), jnp.float32)
    w1, b1, w2, b2 = init_params(kp)
    params = pad_params(w1, b1, w2, b2)

    out = net_forward(x, *params)
    jax.block_until_ready(out)

    # pure-JAX reference of the eval-mode forward pass
    ref = jax.nn.log_softmax(jnp.maximum(x @ w1 + b1, 0.0) @ w2 + b2, axis=1)

    assert out.shape == (B, NUM_CLASSES)
    assert bool(jnp.max(jnp.abs(out - ref)) < 1e-3)
    row_sums = jnp.sum(jnp.exp(out), axis=1)       # log_softmax rows exp-sum to 1
    assert bool(jnp.all(jnp.abs(row_sums - 1.0) < 1e-3))

    print("KERNEL_OK")
</pallas_src>

<mosaic_0001>
module attributes {stable_mosaic.version = 11 : i64} {
  func.func @_net_kernel(%arg0: i32, %arg1: memref<2x512xf32, #tpu.memory_space<vmem>>, %arg2: memref<64x128xf32, #tpu.memory_space<vmem>>, %arg3: memref<64x1xf32, #tpu.memory_space<vmem>>, %arg4: memref<8x64xf32, #tpu.memory_space<vmem>>, %arg5: memref<8x1xf32, #tpu.memory_space<vmem>>, %arg6: memref<2x512xf32, #tpu.memory_space<vmem>>) attributes {dimension_semantics = [#tpu.dimension_semantics<parallel>], iteration_bounds = array<i64: 2>, scalar_prefetch = 0 : i64, scratch_operands = 0 : i64, tpu.core_type = #tpu.core_type<tc>, window_params = [{transform_indices = @transform_0, window_bounds = array<i64: 2, 512>}, {pipeline_mode = #tpu.pipeline_mode<synchronous>, transform_indices = @transform_1, window_bounds = array<i64: 64, 128>}, {pipeline_mode = #tpu.pipeline_mode<synchronous>, transform_indices = @transform_2, window_bounds = array<i64: 64, 1>}, {pipeline_mode = #tpu.pipeline_mode<synchronous>, transform_indices = @transform_3, window_bounds = array<i64: 8, 64>}, {pipeline_mode = #tpu.pipeline_mode<synchronous>, transform_indices = @transform_4, window_bounds = array<i64: 8, 1>}, {transform_indices = @transform_5, window_bounds = array<i64: 2, 512>}]} {
    %c0 = arith.constant 0 : index
    %c0_0 = arith.constant 0 : index
    %0 = vector.load %arg1[%c0, %c0_0] : memref<2x512xf32, #tpu.memory_space<vmem>>, vector<1x512xf32>
    %c1 = arith.constant 1 : index
    %c0_1 = arith.constant 0 : index
    %1 = vector.load %arg1[%c1, %c0_1] : memref<2x512xf32, #tpu.memory_space<vmem>>, vector<1x512xf32>
    %c0_2 = arith.constant 0 : index
    %c0_3 = arith.constant 0 : index
    %2 = vector.load %arg2[%c0_2, %c0_3] : memref<64x128xf32, #tpu.memory_space<vmem>>, vector<64x1xf32>
    %3 = vector.broadcast %2 : vector<64x1xf32> to vector<64x512xf32>
    %4 = vector.broadcast %0 : vector<1x512xf32> to vector<64x512xf32>
    %5 = arith.mulf %3, %4 : vector<64x512xf32>
    %c0_4 = arith.constant 0 : index
    %c1_5 = arith.constant 1 : index
    %6 = vector.load %arg2[%c0_4, %c1_5] : memref<64x128xf32, #tpu.memory_space<vmem>>, vector<64x1xf32>
    %7 = vector.broadcast %6 : vector<64x1xf32> to vector<64x512xf32>
    %8 = vector.broadcast %1 : vector<1x512xf32> to vector<64x512xf32>
    %9 = arith.mulf %7, %8 : vector<64x512xf32>
    %10 = arith.addf %5, %9 : vector<64x512xf32>
    %c0_6 = arith.constant 0 : index
    %c0_7 = arith.constant 0 : index
    %11 = vector.load %arg3[%c0_6, %c0_7] : memref<64x1xf32, #tpu.memory_space<vmem>>, vector<64x1xf32>
    %12 = vector.broadcast %11 : vector<64x1xf32> to vector<64x512xf32>
    %13 = arith.addf %10, %12 : vector<64x512xf32>
    %cst = arith.constant 0.000000e+00 : f32
    %14 = vector.broadcast %cst : f32 to vector<64x512xf32>
    %15 = arith.maximumf %13, %14 : vector<64x512xf32>
    %c0_8 = arith.constant 0 : index
    %c0_9 = arith.constant 0 : index
    %16 = vector.load %arg4[%c0_8, %c0_9] : memref<8x64xf32, #tpu.memory_space<vmem>>, vector<8x64xf32>
    %cst_10 = arith.constant dense<0.000000e+00> : vector<8x512xf32>
    %17 = tpu.matmul %16, %15, %cst_10 {dimension_numbers = #tpu.dot_dimension_numbers<[1], [0], [0], [1], [0, 0, 1, 1], [], []>} : vector<8x64xf32>, vector<64x512xf32>, vector<8x512xf32> -> vector<8x512xf32>
    %c0_11 = arith.constant 0 : index
    %c0_12 = arith.constant 0 : index
    %18 = vector.load %arg5[%c0_11, %c0_12] : memref<8x1xf32, #tpu.memory_space<vmem>>, vector<8x1xf32>
    %19 = vector.broadcast %18 : vector<8x1xf32> to vector<8x512xf32>
    %20 = arith.addf %17, %19 : vector<8x512xf32>
    %21 = vector.extract_strided_slice %20 {offsets = [0, 0], sizes = [1, 512], strides = [1, 1]} : vector<8x512xf32> to vector<1x512xf32>
    %22 = vector.extract_strided_slice %20 {offsets = [1, 0], sizes = [1, 512], strides = [1, 1]} : vector<8x512xf32> to vector<1x512xf32>
    %23 = arith.maximumf %21, %22 : vector<1x512xf32>
    %24 = arith.subf %21, %23 : vector<1x512xf32>
    %25 = math.exp %24 : vector<1x512xf32>
    %26 = arith.subf %22, %23 : vector<1x512xf32>
    %27 = math.exp %26 : vector<1x512xf32>
    %28 = arith.addf %25, %27 : vector<1x512xf32>
    %29 = math.log %28 : vector<1x512xf32>
    %30 = arith.addf %23, %29 : vector<1x512xf32>
    %31 = vector.extract_strided_slice %20 {offsets = [0, 0], sizes = [2, 512], strides = [1, 1]} : vector<8x512xf32> to vector<2x512xf32>
    %32 = vector.broadcast %30 : vector<1x512xf32> to vector<2x512xf32>
    %33 = arith.subf %31, %32 : vector<2x512xf32>
    %c0_13 = arith.constant 0 : index
    %c0_14 = arith.constant 0 : index
    %34 = vector.load %arg6[%c0_13, %c0_14] : memref<2x512xf32, #tpu.memory_space<vmem>>, vector<2x512xf32>
    tpu.vector_store %arg6[%c0_13, %c0_14], %33 {strides = array<i32>} : memref<2x512xf32, #tpu.memory_space<vmem>>, vector<2x512xf32>,
    return
  }
  func.func @transform_0(%arg0: i32) -> (i32, i32) {
    %c0_i32 = arith.constant 0 : i32
    %c0_i32_0 = arith.constant 0 : i32
    return %c0_i32, %arg0 : i32, i32
  }
  func.func @transform_1(%arg0: i32) -> (i32, i32) {
    %c0_i32 = arith.constant 0 : i32
    %c0_i32_0 = arith.constant 0 : i32
    %c0_i32_1 = arith.constant 0 : i32
    return %c0_i32, %c0_i32_0 : i32, i32
  }
  func.func @transform_2(%arg0: i32) -> (i32, i32) {
    %c0_i32 = arith.constant 0 : i32
    %c0_i32_0 = arith.constant 0 : i32
    %c0_i32_1 = arith.constant 0 : i32
    return %c0_i32, %c0_i32_0 : i32, i32
  }
  func.func @transform_3(%arg0: i32) -> (i32, i32) {
    %c0_i32 = arith.constant 0 : i32
    %c0_i32_0 = arith.constant 0 : i32
    %c0_i32_1 = arith.constant 0 : i32
    return %c0_i32, %c0_i32_0 : i32, i32
  }
  func.func @transform_4(%arg0: i32) -> (i32, i32) {
    %c0_i32 = arith.constant 0 : i32
    %c0_i32_0 = arith.constant 0 : i32
    %c0_i32_1 = arith.constant 0 : i32
    return %c0_i32, %c0_i32_0 : i32, i32
  }
  func.func @transform_5(%arg0: i32) -> (i32, i32) {
    %c0_i32 = arith.constant 0 : i32
    %c0_i32_0 = arith.constant 0 : i32
    return %c0_i32, %arg0 : i32, i32
  }
}

</mosaic_0001>

<llo_original>
// kernel: net_forward.1
$region0: #{net_forward.1}
  #allocation0 [shape = 'u32[]', space=smem, size = 0x4, offset = 0x4, fixed_abs, tag = 'smem constant byte address 0x4 - core index']
  #allocation1 [shape = 'u32[144,128]{1,0:T(1,128)}', space=vmem, size = 0x12000, scoped, tag = 'internal scratch']
  %s0 = inlined_call_operand.vmem [shape: f32[2,1024], index: 0, kind: input, shape index: {}]
  %s1 = inlined_call_operand.vmem [shape: f32[64,128], index: 1, kind: input, shape index: {}]
  %s2 = inlined_call_operand.vmem [shape: f32[64,1], index: 2, kind: input, shape index: {}]
  %s3 = inlined_call_operand.vmem [shape: f32[8,64], index: 3, kind: input, shape index: {}]
  %s4 = inlined_call_operand.vmem [shape: f32[8,1], index: 4, kind: input, shape index: {}]
  %s5 = inlined_call_operand.hbm [shape: f32[2,1024], index: 5, kind: output, shape index: {}]
  %s6 = sld [smem:[#allocation0]]
  $region53: #{net_forward.1} parent=0
    _
  %s8 = ssub.s32 1, %s6
  %s9 = scalar_select 0, %s8, %s6
  $region1: #{net_forward.1} parent=0
    #allocation2 [shape = 'u8[8192]{0}', space=vmem, size = 0x2000, scoped, tag = 'output window, operand 0']
    #allocation3 [shape = 's32[2]{0}', space=sflag, size = 0x8, scoped, tag = 'scoped memory for net_forward.1']
    %10 = vsyncpa [#allocation3], 0
    %s11 = scalar_lea.sflag [#allocation3], 1
    %12 = vsyncpa %s11, 0
    loop: start=0, step=1, limit=4
    $region2: #{net_forward.1} parent=1 // loop_pre_header
      _
    $region3: #{net_forward.1} parent=1 // loop_header
      %s14 = sphi 0, %s18
      %p15 = scmp.ge.s32.totalorder %s14, 4
      %s24 = sphi 0, %s26
      %s27 = sphi 0, %s24
      %s28 = sphi 0, %s27
      %s44 = sphi 0, %s28
      %s48 = sphi 0, %s48
      %s50 = sphi 0, %s48
      %s51 = sphi 0, %s50
      %s65 = sphi 0, %s51
      %s69 = sphi 0, %s69
      %s71 = sphi 0, %s69
      %s72 = sphi 0, %s71
      %s86 = sphi 0, %s72
      %s90 = sphi 0, %s90
      %s92 = sphi 0, %s90
      %s93 = sphi 0, %s92
      %s107 = sphi 0, %s93
      %s111 = sphi 0, %s111
      %s113 = sphi 0, %s111
      %s114 = sphi 0, %s113
      %s128 = sphi 0, %s114
      %s134 = sphi 0, %s136
      %s137 = sphi 0, %s134
      %s138 = sphi 0, %s137
      %s154 = sphi 0, %s138
    $region4: #{net_forward.1} parent=1 // loop_header_branch
      %17 = sbr.rel (%p15) target = $region8
    $region5: #{net_forward.1} parent=1 // loop_body
      %s19 = ssub.s32 %s14, 1
      %s20 = ssub.s32 %s14, 2
      %s21 = sadd.s32 %s14, 1
      %s22 = ssub.s32 %s14, %s21
      %p23 = scmp.eq.s32.totalorder %s22, 0
      %s25 = sadd.s32 %s24, 1
      %s26 = scalar_select %p23, %s24, %s25
      %p29 = pneg %p23
      %p30 = scmp.eq.s32.totalorder %s14, 1
      %p31 = por %p29, %p30
      %p32 = scmp.ne.s32.totalorder %s24, %s27
      %p33 = scmp.eq.s32.totalorder %s14, 0
      %p34 = por %p32, %p33
      %p35 = scmp.ne.s32.totalorder %s24, %s27
      %p36 = scmp.eq.s32.totalorder %s19, 1
      %p37 = por %p35, %p36
      %p38 = scmp.ne.s32.totalorder %s27, %s28
      %p39 = scmp.eq.s32.totalorder %s19, 0
      %p40 = por %p38, %p39
      %p41 = scmp.ne.s32.totalorder %s27, %s28
      %p42 = scmp.eq.s32.totalorder %s20, 1
      %p43 = por %p41, %p42
      %p45 = scmp.ne.s32.totalorder %s28, %s44
      %p46 = scmp.eq.s32.totalorder %s20, 0
      %p47 = por %p45, %p46
      %s49 = sadd.s32 %s48, 1
      %p52 = scmp.eq.s32.totalorder %s14, 1
      %p53 = scmp.ne.s32.totalorder %s48, %s50
      %p54 = scmp.eq.s32.totalorder %s14, 0
      %p55 = por %p53, %p54
      %p56 = scmp.ne.s32.totalorder %s48, %s50
      %p57 = scmp.eq.s32.totalorder %s19, 1
      %p58 = por %p56, %p57
      %p59 = scmp.ne.s32.totalorder %s50, %s51
      %p60 = scmp.eq.s32.totalorder %s19, 0
      %p61 = por %p59, %p60
      %p62 = scmp.ne.s32.totalorder %s50, %s51
      %p63 = scmp.eq.s32.totalorder %s20, 1
      %p64 = por %p62, %p63
      %p66 = scmp.ne.s32.totalorder %s51, %s65
      %p67 = scmp.eq.s32.totalorder %s20, 0
      %p68 = por %p66, %p67
      %s70 = sadd.s32 %s69, 1
      %p73 = scmp.eq.s32.totalorder %s14, 1
      %p74 = scmp.ne.s32.totalorder %s69, %s71
      %p75 = scmp.eq.s32.totalorder %s14, 0
      %p76 = por %p74, %p75
      %p77 = scmp.ne.s32.totalorder %s69, %s71
      %p78 = scmp.eq.s32.totalorder %s19, 1
      %p79 = por %p77, %p78
      %p80 = scmp.ne.s32.totalorder %s71, %s72
      %p81 = scmp.eq.s32.totalorder %s19, 0
      %p82 = por %p80, %p81
      %p83 = scmp.ne.s32.totalorder %s71, %s72
      %p84 = scmp.eq.s32.totalorder %s20, 1
      %p85 = por %p83, %p84
      %p87 = scmp.ne.s32.totalorder %s72, %s86
      %p88 = scmp.eq.s32.totalorder %s20, 0
      %p89 = por %p87, %p88
      %s91 = sadd.s32 %s90, 1
      %p94 = scmp.eq.s32.totalorder %s14, 1
      %p95 = scmp.ne.s32.totalorder %s90, %s92
      %p96 = scmp.eq.s32.totalorder %s14, 0
      %p97 = por %p95, %p96
      %p98 = scmp.ne.s32.totalorder %s90, %s92
      %p99 = scmp.eq.s32.totalorder %s19, 1
      %p100 = por %p98, %p99
      %p101 = scmp.ne.s32.totalorder %s92, %s93
      %p102 = scmp.eq.s32.totalorder %s19, 0
      %p103 = por %p101, %p102
      %p104 = scmp.ne.s32.totalorder %s92, %s93
      %p105 = scmp.eq.s32.totalorder %s20, 1
      %p106 = por %p104, %p105
      %p108 = scmp.ne.s32.totalorder %s93, %s107
      %p109 = scmp.eq.s32.totalorder %s20, 0
      %p110 = por %p108, %p109
      %s112 = sadd.s32 %s111, 1
      %p115 = scmp.eq.s32.totalorder %s14, 1
      %p116 = scmp.ne.s32.totalorder %s111, %s113
      %p117 = scmp.eq.s32.totalorder %s14, 0
      %p118 = por %p116, %p117
      %p119 = scmp.ne.s32.totalorder %s111, %s113
      %p120 = scmp.eq.s32.totalorder %s19, 1
      %p121 = por %p119, %p120
      %p122 = scmp.ne.s32.totalorder %s113, %s114
      %p123 = scmp.eq.s32.totalorder %s19, 0
      %p124 = por %p122, %p123
      %p125 = scmp.ne.s32.totalorder %s113, %s114
      %p126 = scmp.eq.s32.totalorder %s20, 1
      %p127 = por %p125, %p126
      %p129 = scmp.ne.s32.totalorder %s114, %s128
      %p130 = scmp.eq.s32.totalorder %s20, 0
      %p131 = por %p129, %p130
      %s132 = ssub.s32 %s14, %s21
      %p133 = scmp.eq.s32.totalorder %s132, 0
      %s135 = sadd.s32 %s134, 1
      %s136 = scalar_select %p133, %s134, %s135
      %p139 = pneg %p133
      %p140 = scmp.eq.s32.totalorder %s14, 1
      %p141 = por %p139, %p140
      %p142 = scmp.ne.s32.totalorder %s134, %s137
      %p143 = scmp.eq.s32.totalorder %s14, 0
      %p144 = por %p142, %p143
      %p145 = scmp.ne.s32.totalorder %s134, %s137
      %p146 = scmp.eq.s32.totalorder %s19, 1
      %p147 = por %p145, %p146
      %p148 = scmp.ne.s32.totalorder %s137, %s138
      %p149 = scmp.eq.s32.totalorder %s19, 0
      %p150 = por %p148, %p149
      %p151 = scmp.ne.s32.totalorder %s137, %s138
      %p152 = scmp.eq.s32.totalorder %s20, 1
      %p153 = por %p151, %p152
      %p155 = scmp.ne.s32.totalorder %s138, %s154
      %p156 = scmp.eq.s32.totalorder %s20, 0
      %p157 = por %p155, %p156
      %p158 = scmp.le.s32.totalorder 1, %s14
      %p159 = scmp.lt.s32.totalorder %s14, 3
      %p160 = pnand %p158, %p159
      %p161 = pneg %p160
      // Predicated region
      $region9: #{net_forward.1} parent=5 // pred_check
        _
      $region10: #{net_forward.1} parent=5 // pred_check_branch
        %163 = sbr.rel (%p160) target = $region12
      $region11: #{net_forward.1} parent=5 // pred_region
        %s164 = ssub.s32 %s14, 1
        // Predicated region
        $region13: #{net_forward.1} parent=11 // pred_check
          %p165 = pneg %p61
        $region14: #{net_forward.1} parent=11 // pred_check_branch
          %167 = sbr.rel (%p165) target = $region16
        $region15: #{net_forward.1} parent=11 // pred_region
          _
        $region16: #{net_forward.1} parent=11 // pred_fallthru
          _
        // Predicated region
        $region17: #{net_forward.1} parent=11 // pred_check
          %p168 = pneg %p82
        $region18: #{net_forward.1} parent=11 // pred_check_branch
          %170 = sbr.rel (%p168) target = $region20
        $region19: #{net_forward.1} parent=11 // pred_region
          _
        $region20: #{net_forward.1} parent=11 // pred_fallthru
          _
        // Predicated region
        $region21: #{net_forward.1} parent=11 // pred_check
          %p171 = pneg %p103
        $region22: #{net_forward.1} parent=11 // pred_check_branch
          %173 = sbr.rel (%p171) target = $region24
        $region23: #{net_forward.1} parent=11 // pred_region
          _
        $region24: #{net_forward.1} parent=11 // pred_fallthru
          _
        // Predicated region
        $region25: #{net_forward.1} parent=11 // pred_check
          %p174 = pneg %p124
        $region26: #{net_forward.1} parent=11 // pred_check_branch
          %176 = sbr.rel (%p174) target = $region28
        $region27: #{net_forward.1} parent=11 // pred_region
          _
        $region28: #{net_forward.1} parent=11 // pred_fallthru
          _
      $region12: #{net_forward.1} parent=5 // pred_fallthru
        _
      %p177 = scmp.lt.s32.totalorder %s14, 2
      // Predicated region
      $region29: #{net_forward.1} parent=5 // pred_check
        %p178 = pneg %p177
      $region30: #{net_forward.1} parent=5 // pred_check_branch
        %180 = sbr.rel (%p178) target = $region32
      $region31: #{net_forward.1} parent=5 // pred_region
        // Predicated region
        $region33: #{net_forward.1} parent=31 // pred_check
          %p181 = pneg %p34
        $region34: #{net_forward.1} parent=31 // pred_check_branch
          %183 = sbr.rel (%p181) target = $region36
        $region35: #{net_forward.1} parent=31 // pred_region
          %s184 = smul.u32 4, %s14
          %p185 = scmp.lt.s32.totalorder %s184, 7
          %s186 = scalar_select %p185, %s184, 7
          %s187 = smul.addr %s186, 2
          %s188 = scalar_lea.vmem %s0, %s187
          %s189 = smul.u32 4, %s14
        $region36: #{net_forward.1} parent=31 // pred_fallthru
          _
      $region32: #{net_forward.1} parent=5 // pred_fallthru
        _
      %p190 = scmp.le.s32.totalorder 1, %s14
      %p191 = scmp.lt.s32.totalorder %s14, 3
      %p192 = pnand %p190, %p191
      %p193 = pneg %p192
      // Predicated region
      $region37: #{net_forward.1} parent=5 // pred_check
        _
      $region38: #{net_forward.1} parent=5 // pred_check_branch
        %195 = sbr.rel (%p192) target = $region40
      $region39: #{net_forward.1} parent=5 // pred_region
        %s196 = ssub.s32 %s14, 1
        %s197 = smul.u32 4, %s19
        %p198 = scmp.lt.s32.totalorder %s197, 7
        %s199 = scalar_select %p198, %s197, 7
        %s200 = smul.addr %s199, 2
        %s201 = scalar_lea.vmem %s0, %s200
        %p202 = pneg %p40
        %p203 = pneg %p37
        %p204 = pneg %p61
        %p205 = pneg %p58
        %p206 = pneg %p82
        %p207 = pneg %p79
        %p208 = pneg %p103
        %p209 = pneg %p100
        %p210 = pneg %p124
        %p211 = pneg %p121
        %p212 = pneg %p150
        %p213 = pneg %p147
        %s214 = sand.u32 %s137, 1
        %s215 = scalar_lea.sflag [#allocation3], %s214
        %s216 = sand.u32 %s137, 1
        %s217 = smul.addr %s216, 8
        %s218 = scalar_lea.vmem [#allocation2], %s217
        %s219 = smul.u32 4, %s19
        %p220 = scmp.lt.s32.totalorder %s219, 7
        %s221 = scalar_select %p220, %s219, 7
        %s222 = smul.addr %s221, 2
        %s223 = scalar_lea.vmem %s0, %s222
        %s224 = smul.u32 4, %s19
        %s225 = smul.u32 4, %s19
        %v226 = vld [vmem:[%s223] ss:$2 sm:$0xf]
        %s227 = scalar_lea.vmem %s223, 1
        %v228 = vld [vmem:[%s227] ss:$2 sm:$0xf]
        %v229 = vld [vmem:[%s1] sm:$0xff]
        %v230 = vld [vmem:[%s1 + $0x8] sm:$0xff]
        %v231 = vld [vmem:[%s1 + $0x10] sm:$0xff]
        %v232 = vld [vmem:[%s1 + $0x18] sm:$0xff]
        %v233 = vld [vmem:[%s1 + $0x20] sm:$0xff]
        %v234 = vld [vmem:[%s1 + $0x28] sm:$0xff]
        %v235 = vld [vmem:[%s1 + $0x30] sm:$0xff]
        %v236 = vld [vmem:[%s1 + $0x38] sm:$0xff]
        %238 = vset.pattern.permute.xlu0 0
        %239 = vperm.xlu0 %238, %v229
        %v240 = vpop.permute.xlu0 %239
        %243 = vset.pattern.permute.xlu0 0
        %244 = vperm.xlu0 %243, %v230
        %v245 = vpop.permute.xlu0 %244
        %248 = vset.pattern.permute.xlu0 0
        %249 = vperm.xlu0 %248, %v231
        %v250 = vpop.permute.xlu0 %249
        %253 = vset.pattern.permute.xlu0 0
        %254 = vperm.xlu0 %253, %v232
        %v255 = vpop.permute.xlu0 %254
        %258 = vset.pattern.permute.xlu0 0
        %259 = vperm.xlu0 %258, %v233
        %v260 = vpop.permute.xlu0 %259
        %263 = vset.pattern.permute.xlu0 0
        %264 = vperm.xlu0 %263, %v234
        %v265 = vpop.permute.xlu0 %264
        %268 = vset.pattern.permute.xlu0 0
        %269 = vperm.xlu0 %268, %v235
        %v270 = vpop.permute.xlu0 %269
        %273 = vset.pattern.permute.xlu0 0
        %274 = vperm.xlu0 %273, %v236
        %v275 = vpop.permute.xlu0 %274
        %v278 = vlaneseq
        %v279 = vshrl.u32 %v278, 7
        %v280 = vsub.s32 0, %v279
        %v281 = vrot.slane %v226, %v280
        %v282 = vlaneseq
        %v283 = vshrl.u32 %v282, 7
        %v284 = vsub.s32 1, %v283
        %v285 = vrot.slane %v226, %v284
        %v286 = vlaneseq
        %v287 = vshrl.u32 %v286, 7
        %v288 = vsub.s32 2, %v287
        %v289 = vrot.slane %v226, %v288
        %v290 = vlaneseq
        %v291 = vshrl.u32 %v290, 7
        %v292 = vsub.s32 3, %v291
        %v293 = vrot.slane %v226, %v292
        %v298 = vmul.f32 %v240, %v281
        %v299 = vmul.f32 %v240, %v285
        %v300 = vmul.f32 %v240, %v289
        %v301 = vmul.f32 %v240, %v293
        %v302 = vmul.f32 %v245, %v281
        %v303 = vmul.f32 %v245, %v285
        %v304 = vmul.f32 %v245, %v289
        %v305 = vmul.f32 %v245, %v293
        %v306 = vmul.f32 %v250, %v281
        %v307 = vmul.f32 %v250, %v285
        %v308 = vmul.f32 %v250, %v289
        %v309 = vmul.f32 %v250, %v293
        %v310 = vmul.f32 %v255, %v281
        %v311 = vmul.f32 %v255, %v285
        %v312 = vmul.f32 %v255, %v289
        %v313 = vmul.f32 %v255, %v293
        %v314 = vmul.f32 %v260, %v281
        %v315 = vmul.f32 %v260, %v285
        %v316 = vmul.f32 %v260, %v289
        %v317 = vmul.f32 %v260, %v293
        %v318 = vmul.f32 %v265, %v281
        %v319 = vmul.f32 %v265, %v285
        %v320 = vmul.f32 %v265, %v289
        %v321 = vmul.f32 %v265, %v293
        %v322 = vmul.f32 %v270, %v281
        %v323 = vmul.f32 %v270, %v285
        %v324 = vmul.f32 %v270, %v289
        %v325 = vmul.f32 %v270, %v293
        %v326 = vmul.f32 %v275, %v281
        %v327 = vmul.f32 %v275, %v285
        %v328 = vmul.f32 %v275, %v289
        %v329 = vmul.f32 %v275, %v293
        %330 = vset.pattern.permute.xlu0 1
        %331 = vperm.xlu0 %330, %v229
        %v332 = vpop.permute.xlu0 %331
        %334 = vset.pattern.permute.xlu0 1
        %335 = vperm.xlu0 %334, %v230
        %v336 = vpop.permute.xlu0 %335
        %338 = vset.pattern.permute.xlu0 1
        %339 = vperm.xlu0 %338, %v231
        %v340 = vpop.permute.xlu0 %339
        %342 = vset.pattern.permute.xlu0 1
        %343 = vperm.xlu0 %342, %v232
        %v344 = vpop.permute.xlu0 %343
        %346 = vset.pattern.permute.xlu0 1
        %347 = vperm.xlu0 %346, %v233
        %v348 = vpop.permute.xlu0 %347
        %350 = vset.pattern.permute.xlu0 1
        %351 = vperm.xlu0 %350, %v234
        %v352 = vpop.permute.xlu0 %351
        %354 = vset.pattern.permute.xlu0 1
        %355 = vperm.xlu0 %354, %v235
        %v356 = vpop.permute.xlu0 %355
        %358 = vset.pattern.permute.xlu0 1
        %359 = vperm.xlu0 %358, %v236
        %v360 = vpop.permute.xlu0 %359
        %v363 = vlaneseq
        %v364 = vshrl.u32 %v363, 7
        %v365 = vsub.s32 0, %v364
        %v366 = vrot.slane %v228, %v365
        %v367 = vlaneseq
        %v368 = vshrl.u32 %v367, 7
        %v369 = vsub.s32 1, %v368
        %v370 = vrot.slane %v228, %v369
        %v371 = vlaneseq
        %v372 = vshrl.u32 %v371, 7
        %v373 = vsub.s32 2, %v372
        %v374 = vrot.slane %v228, %v373
        %v375 = vlaneseq
        %v376 = vshrl.u32 %v375, 7
        %v377 = vsub.s32 3, %v376
        %v378 = vrot.slane %v228, %v377
        %v383 = vmul.f32 %v332, %v366
        %v384 = vmul.f32 %v332, %v370
        %v385 = vmul.f32 %v332, %v374
        %v386 = vmul.f32 %v332, %v378
        %v387 = vmul.f32 %v336, %v366
        %v388 = vmul.f32 %v336, %v370
        %v389 = vmul.f32 %v336, %v374
        %v390 = vmul.f32 %v336, %v378
        %v391 = vmul.f32 %v340, %v366
        %v392 = vmul.f32 %v340, %v370
        %v393 = vmul.f32 %v340, %v374
        %v394 = vmul.f32 %v340, %v378
        %v395 = vmul.f32 %v344, %v366
        %v396 = vmul.f32 %v344, %v370
        %v397 = vmul.f32 %v344, %v374
        %v398 = vmul.f32 %v344, %v378
        %v399 = vmul.f32 %v348, %v366
        %v400 = vmul.f32 %v348, %v370
        %v401 = vmul.f32 %v348, %v374
        %v402 = vmul.f32 %v348, %v378
        %v403 = vmul.f32 %v352, %v366
        %v404 = vmul.f32 %v352, %v370
        %v405 = vmul.f32 %v352, %v374
        %v406 = vmul.f32 %v352, %v378
        %v407 = vmul.f32 %v356, %v366
        %v408 = vmul.f32 %v356, %v370
        %v409 = vmul.f32 %v356, %v374
        %v410 = vmul.f32 %v356, %v378
        %v411 = vmul.f32 %v360, %v366
        %v412 = vmul.f32 %v360, %v370
        %v413 = vmul.f32 %v360, %v374
        %v414 = vmul.f32 %v360, %v378
        %v415 = vadd.f32 %v298, %v383
        %v416 = vadd.f32 %v299, %v384
        %v417 = vadd.f32 %v300, %v385
        %v418 = vadd.f32 %v301, %v386
        %v419 = vadd.f32 %v302, %v387
        %v420 = vadd.f32 %v303, %v388
        %v421 = vadd.f32 %v304, %v389
        %v422 = vadd.f32 %v305, %v390
        %v423 = vadd.f32 %v306, %v391
        %v424 = vadd.f32 %v307, %v392
        %v425 = vadd.f32 %v308, %v393
        %v426 = vadd.f32 %v309, %v394
        %v427 = vadd.f32 %v310, %v395
        %v428 = vadd.f32 %v311, %v396
        %v429 = vadd.f32 %v312, %v397
        %v430 = vadd.f32 %v313, %v398
        %v431 = vadd.f32 %v314, %v399
        %v432 = vadd.f32 %v315, %v400
        %v433 = vadd.f32 %v316, %v401
        %v434 = vadd.f32 %v317, %v402
        %v435 = vadd.f32 %v318, %v403
        %v436 = vadd.f32 %v319, %v404
        %v437 = vadd.f32 %v320, %v405
        %v438 = vadd.f32 %v321, %v406
        %v439 = vadd.f32 %v322, %v407
        %v440 = vadd.f32 %v323, %v408
        %v441 = vadd.f32 %v324, %v409
        %v442 = vadd.f32 %v325, %v410
        %v443 = vadd.f32 %v326, %v411
        %v444 = vadd.f32 %v327, %v412
        %v445 = vadd.f32 %v328, %v413
        %v446 = vadd.f32 %v329, %v414
        %v447 = vld [vmem:[%s2] sm:$0xff]
        %v448 = vld [vmem:[%s2 + $0x8] sm:$0xff]
        %v449 = vld [vmem:[%s2 + $0x10] sm:$0xff]
        %v450 = vld [vmem:[%s2 + $0x18] sm:$0xff]
        %v451 = vld [vmem:[%s2 + $0x20] sm:$0xff]
        %v452 = vld [vmem:[%s2 + $0x28] sm:$0xff]
        %v453 = vld [vmem:[%s2 + $0x30] sm:$0xff]
        %v454 = vld [vmem:[%s2 + $0x38] sm:$0xff]
        %456 = vset.pattern.permute.xlu0 0
        %457 = vperm.xlu0 %456, %v447
        %v458 = vpop.permute.xlu0 %457
        %461 = vset.pattern.permute.xlu0 0
        %462 = vperm.xlu0 %461, %v448
        %v463 = vpop.permute.xlu0 %462
        %466 = vset.pattern.permute.xlu0 0
        %467 = vperm.xlu0 %466, %v449
        %v468 = vpop.permute.xlu0 %467
        %471 = vset.pattern.permute.xlu0 0
        %472 = vperm.xlu0 %471, %v450
        %v473 = vpop.permute.xlu0 %472
        %476 = vset.pattern.permute.xlu0 0
        %477 = vperm.xlu0 %476, %v451
        %v478 = vpop.permute.xlu0 %477
        %481 = vset.pattern.permute.xlu0 0
        %482 = vperm.xlu0 %481, %v452
        %v483 = vpop.permute.xlu0 %482
        %486 = vset.pattern.permute.xlu0 0
        %487 = vperm.xlu0 %486, %v453
        %v488 = vpop.permute.xlu0 %487
        %491 = vset.pattern.permute.xlu0 0
        %492 = vperm.xlu0 %491, %v454
        %v493 = vpop.permute.xlu0 %492
        %v495 = vadd.f32 %v415, %v458
        %v496 = vadd.f32 %v416, %v458
        %v497 = vadd.f32 %v417, %v458
        %v498 = vadd.f32 %v418, %v458
        %v499 = vadd.f32 %v419, %v463
        %v500 = vadd.f32 %v420, %v463
        %v501 = vadd.f32 %v421, %v463
        %v502 = vadd.f32 %v422, %v463
        %v503 = vadd.f32 %v423, %v468
        %v504 = vadd.f32 %v424, %v468
        %v505 = vadd.f32 %v425, %v468
        %v506 = vadd.f32 %v426, %v468
        %v507 = vadd.f32 %v427, %v473
        %v508 = vadd.f32 %v428, %v473
        %v509 = vadd.f32 %v429, %v473
        %v510 = vadd.f32 %v430, %v473
        %v511 = vadd.f32 %v431, %v478
        %v512 = vadd.f32 %v432, %v478
        %v513 = vadd.f32 %v433, %v478
        %v514 = vadd.f32 %v434, %v478
        %v515 = vadd.f32 %v435, %v483
        %v516 = vadd.f32 %v436, %v483
        %v517 = vadd.f32 %v437, %v483
        %v518 = vadd.f32 %v438, %v483
        %v519 = vadd.f32 %v439, %v488
        %v520 = vadd.f32 %v440, %v488
        %v521 = vadd.f32 %v441, %v488
        %v522 = vadd.f32 %v442, %v488
        %v523 = vadd.f32 %v443, %v493
        %v524 = vadd.f32 %v444, %v493
        %v525 = vadd.f32 %v445, %v493
        %v526 = vadd.f32 %v446, %v493
        %v527 = vmax.f32 %v495, 0.0
        %v528 = vmax.f32 %v496, 0.0
        %v529 = vmax.f32 %v497, 0.0
        %v530 = vmax.f32 %v498, 0.0
        %v531 = vmax.f32 %v499, 0.0
        %v532 = vmax.f32 %v500, 0.0
        %v533 = vmax.f32 %v501, 0.0
        %v534 = vmax.f32 %v502, 0.0
        %v535 = vmax.f32 %v503, 0.0
        %v536 = vmax.f32 %v504, 0.0
        %v537 = vmax.f32 %v505, 0.0
        %v538 = vmax.f32 %v506, 0.0
        %v539 = vmax.f32 %v507, 0.0
        %v540 = vmax.f32 %v508, 0.0
        %v541 = vmax.f32 %v509, 0.0
        %v542 = vmax.f32 %v510, 0.0
        %v543 = vmax.f32 %v511, 0.0
        %v544 = vmax.f32 %v512, 0.0
        %v545 = vmax.f32 %v513, 0.0
        %v546 = vmax.f32 %v514, 0.0
        %v547 = vmax.f32 %v515, 0.0
        %v548 = vmax.f32 %v516, 0.0
        %v549 = vmax.f32 %v517, 0.0
        %v550 = vmax.f32 %v518, 0.0
        %v551 = vmax.f32 %v519, 0.0
        %v552 = vmax.f32 %v520, 0.0
        %v553 = vmax.f32 %v521, 0.0
        %v554 = vmax.f32 %v522, 0.0
        %v555 = vmax.f32 %v523, 0.0
        %v556 = vmax.f32 %v524, 0.0
        %v557 = vmax.f32 %v525, 0.0
        %v558 = vmax.f32 %v526, 0.0
        %v559 = vld [vmem:[%s3] sm:$0xff]
        %v560 = vld [vmem:[%s4] sm:$0xff]
        %562 = vset.pattern.permute.xlu0 0
        %563 = vperm.xlu0 %562, %v560
        %v564 = vpop.permute.xlu0 %563
        %vm566 = vcmask 523264
        %v568 = vsel %vm566, %v559, 0
        %570 = vmatprep.subr.mxu0 %v528
        %571 = vmatpush1.msra.mxu0 %v527
        %572 = vmatprep.subr.mxu0 %v532
        %573 = vmatpush1.msra.mxu0 %v531
        %574 = vmatprep.subr.mxu0 %v536
        %575 = vmatpush1.msra.mxu0 %v535
        %576 = vmatprep.subr.mxu0 %v540
        %577 = vmatpush1.msra.mxu0 %v539
        %578 = vmatprep.subr.mxu0 %v544
        %579 = vmatpush1.msra.mxu0 %v543
        %580 = vmatprep.subr.mxu0 %v548
        %581 = vmatpush1.msra.mxu0 %v547
        %582 = vmatprep.subr.mxu0 %v552
        %583 = vmatpush1.msra.mxu0 %v551
        %584 = vmatprep.subr.mxu0 %v556
        %585 = vmatpush1.msra.mxu0 %v555
        %586 = vmatprep.subr.mxu0 0.0
        %587 = vmatpush1.msra.mxu0 0.0
        %588 = vmatprep.subr.mxu0 0.0
        %589 = vmatpush1.msra.mxu0 0.0
        %590 = vmatprep.subr.mxu0 0.0
        %591 = vmatpush1.msra.mxu0 0.0
        %592 = vmatprep.subr.mxu0 0.0
        %593 = vmatpush1.msra.mxu0 0.0
        %594 = vmatprep.subr.mxu0 0.0
        %595 = vmatpush1.msra.mxu0 0.0
        %596 = vmatprep.subr.mxu0 0.0
        %597 = vmatpush1.msra.mxu0 0.0
        %598 = vmatprep.subr.mxu0 0.0
        %599 = vmatpush1.msra.mxu0 0.0
        %600 = vmatprep.subr.mxu0 0.0
        %601 = vmatpush1.msra.mxu0 0.0
        %602 = vmatprep.subr.mxu0 0.0
        %603 = vmatpush1.msra.mxu0 0.0
        %604 = vmatprep.subr.mxu0 0.0
        %605 = vmatpush1.msra.mxu0 0.0
        %606 = vmatprep.subr.mxu0 0.0
        %607 = vmatpush1.msra.mxu0 0.0
        %608 = vmatprep.subr.mxu0 0.0
        %609 = vmatpush1.msra.mxu0 0.0
        %610 = vmatprep.subr.mxu0 0.0
        %611 = vmatpush1.msra.mxu0 0.0
        %612 = vmatprep.subr.mxu0 0.0
        %613 = vmatpush1.msra.mxu0 0.0
        %614 = vmatprep.subr.mxu0 0.0
        %615 = vmatpush1.msra.mxu0 0.0
        %616 = vmatprep.subr.mxu0 0.0
        %617 = vmatpush1.msra.mxu0 0.0
        %618 = vmatprep.subr.mxu0 0.0
        %619 = vmatpush1.msra.mxu0 0.0
        %620 = vmatprep.subr.mxu0 0.0
        %621 = vmatpush1.msra.mxu0 0.0
        %622 = vmatprep.subr.mxu0 0.0
        %623 = vmatpush1.msra.mxu0 0.0
        %624 = vmatprep.subr.mxu0 0.0
        %625 = vmatpush1.msra.mxu0 0.0
        %626 = vmatprep.subr.mxu0 0.0
        %627 = vmatpush1.msra.mxu0 0.0
        %628 = vmatprep.subr.mxu0 0.0
        %629 = vmatpush1.msra.mxu0 0.0
        %630 = vmatprep.subr.mxu0 0.0
        %631 = vmatpush1.msra.mxu0 0.0
        %632 = vmatprep.subr.mxu0 0.0
        %633 = vmatpush1.msra.mxu0 0.0
        %634 = vmatprep.mubr.f32.mxu0 0.0
        %635 = vmatmul.mubr.f32.gmra.mrb[0].mxu0 %v568
        %v636 = vpop.f32.mrb[0].mxu0
        %v637 = vadd.f32 %v564, %v636
        %v638 = vpop.f32.mrb[0].mxu0
        %v639 = vadd.f32 %v564, %v638
        %640 = vdwg.mxu0
        %641 = vmatprep.subr.mxu0 %v530
        %642 = vmatpush1.msra.mxu0 %v529
        %643 = vmatprep.subr.mxu0 %v534
        %644 = vmatpush1.msra.mxu0 %v533
        %645 = vmatprep.subr.mxu0 %v538
        %646 = vmatpush1.msra.mxu0 %v537
        %647 = vmatprep.subr.mxu0 %v542
        %648 = vmatpush1.msra.mxu0 %v541
        %649 = vmatprep.subr.mxu0 %v546
        %650 = vmatpush1.msra.mxu0 %v545
        %651 = vmatprep.subr.mxu0 %v550
        %652 = vmatpush1.msra.mxu0 %v549
        %653 = vmatprep.subr.mxu0 %v554
        %654 = vmatpush1.msra.mxu0 %v553
        %655 = vmatprep.subr.mxu0 %v558
        %656 = vmatpush1.msra.mxu0 %v557
        %657 = vmatprep.subr.mxu0 0.0
        %658 = vmatpush1.msra.mxu0 0.0
        %659 = vmatprep.subr.mxu0 0.0
        %660 = vmatpush1.msra.mxu0 0.0
        %661 = vmatprep.subr.mxu0 0.0
        %662 = vmatpush1.msra.mxu0 0.0
        %663 = vmatprep.subr.mxu0 0.0
        %664 = vmatpush1.msra.mxu0 0.0
        %665 = vmatprep.subr.mxu0 0.0
        %666 = vmatpush1.msra.mxu0 0.0
        %667 = vmatprep.subr.mxu0 0.0
        %668 = vmatpush1.msra.mxu0 0.0
        %669 = vmatprep.subr.mxu0 0.0
        %670 = vmatpush1.msra.mxu0 0.0
        %671 = vmatprep.subr.mxu0 0.0
        %672 = vmatpush1.msra.mxu0 0.0
        %673 = vmatprep.subr.mxu0 0.0
        %674 = vmatpush1.msra.mxu0 0.0
        %675 = vmatprep.subr.mxu0 0.0
        %676 = vmatpush1.msra.mxu0 0.0
        %677 = vmatprep.subr.mxu0 0.0
        %678 = vmatpush1.msra.mxu0 0.0
        %679 = vmatprep.subr.mxu0 0.0
        %680 = vmatpush1.msra.mxu0 0.0
        %681 = vmatprep.subr.mxu0 0.0
        %682 = vmatpush1.msra.mxu0 0.0
        %683 = vmatprep.subr.mxu0 0.0
        %684 = vmatpush1.msra.mxu0 0.0
        %685 = vmatprep.subr.mxu0 0.0
        %686 = vmatpush1.msra.mxu0 0.0
        %687 = vmatprep.subr.mxu0 0.0
        %688 = vmatpush1.msra.mxu0 0.0
        %689 = vmatprep.subr.mxu0 0.0
        %690 = vmatpush1.msra.mxu0 0.0
        %691 = vmatprep.subr.mxu0 0.0
        %692 = vmatpush1.msra.mxu0 0.0
        %693 = vmatprep.subr.mxu0 0.0
        %694 = vmatpush1.msra.mxu0 0.0
        %695 = vmatprep.subr.mxu0 0.0
        %696 = vmatpush1.msra.mxu0 0.0
        %697 = vmatprep.subr.mxu0 0.0
        %698 = vmatpush1.msra.mxu0 0.0
        %699 = vmatprep.subr.mxu0 0.0
        %700 = vmatpush1.msra.mxu0 0.0
        %701 = vmatprep.subr.mxu0 0.0
        %702 = vmatpush1.msra.mxu0 0.0
        %703 = vmatprep.subr.mxu0 0.0
        %704 = vmatpush1.msra.mxu0 0.0
        %705 = vmatprep.mubr.f32.mxu0 0.0
        %706 = vmatmul.mubr.f32.gmra.mrb[0].mxu0 %v568
        %v707 = vpop.f32.mrb[0].mxu0
        %v708 = vadd.f32 %v564, %v707
        %v709 = vpop.f32.mrb[0].mxu0
        %v710 = vadd.f32 %v564, %v709
        %711 = vdwg.mxu0
        %v716 = vrot.slane %v637, 1
        %v717 = vrot.slane %v639, 1
        %v718 = vrot.slane %v708, 1
        %v719 = vrot.slane %v710, 1
        %v724 = vmax.f32 %v637, %v716
        %v725 = vmax.f32 %v639, %v717
        %v726 = vmax.f32 %v708, %v718
        %v727 = vmax.f32 %v710, %v719
        %v728 = vsub.f32 %v637, %v724
        %v729 = vsub.f32 %v639, %v725
        %v730 = vsub.f32 %v708, %v726
        %v731 = vsub.f32 %v710, %v727
        %v732 = vmul.f32 %v728, 1.442695
        %v733 = vpow.pop %v732
        %v734 = vmul.f32 %v729, 1.442695
        %v735 = vpow.pop %v734
        %v736 = vmul.f32 %v730, 1.442695
        %v737 = vpow.pop %v736
        %v738 = vmul.f32 %v731, 1.442695
        %v739 = vpow.pop %v738
        %v744 = vrot.slane %v724, 7
        %v745 = vrot.slane %v725, 7
        %v746 = vrot.slane %v726, 7
        %v747 = vrot.slane %v727, 7
        %v752 = vsub.f32 %v637, %v744
        %v753 = vsub.f32 %v639, %v745
        %v754 = vsub.f32 %v708, %v746
        %v755 = vsub.f32 %v710, %v747
        %v756 = vmul.f32 %v752, 1.442695
        %v757 = vpow.pop %v756
        %v758 = vmul.f32 %v753, 1.442695
        %v759 = vpow.pop %v758
        %v760 = vmul.f32 %v754, 1.442695
        %v761 = vpow.pop %v760
        %v762 = vmul.f32 %v755, 1.442695
        %v763 = vpow.pop %v762
        %v768 = vrot.slane %v757, 1
        %v769 = vrot.slane %v759, 1
        %v770 = vrot.slane %v761, 1
        %v771 = vrot.slane %v763, 1
        %v776 = vadd.f32 %v733, %v768
        %v777 = vadd.f32 %v735, %v769
        %v778 = vadd.f32 %v737, %v770
        %v779 = vadd.f32 %v739, %v771
        %v780 = vlog2.pop %v776
        %v781 = vmul.f32 %v780, 0.6931472
        %v782 = vlog2.pop %v777
        %v783 = vmul.f32 %v782, 0.6931472
        %v784 = vlog2.pop %v778
        %v785 = vmul.f32 %v784, 0.6931472
        %v786 = vlog2.pop %v779
        %v787 = vmul.f32 %v786, 0.6931472
        %v788 = vadd.f32 %v724, %v781
        %v789 = vadd.f32 %v725, %v783
        %v790 = vadd.f32 %v726, %v785
        %v791 = vadd.f32 %v727, %v787
        %v792 = vlaneseq
        %v793 = vshrl.u32 %v792, 7
        %v794 = vsub.s32 0, %v793
        %v795 = vrot.slane %v788, %v794
        %v796 = vlaneseq
        %v797 = vshrl.u32 %v796, 7
        %v798 = vsub.s32 0, %v797
        %v799 = vrot.slane %v789, %v798
        %v800 = vlaneseq
        %v801 = vshrl.u32 %v800, 7
        %v802 = vsub.s32 0, %v801
        %v803 = vrot.slane %v790, %v802
        %v804 = vlaneseq
        %v805 = vshrl.u32 %v804, 7
        %v806 = vsub.s32 0, %v805
        %v807 = vrot.slane %v791, %v806
        %v808 = vsub.f32 %v637, %v795
        %v809 = vsub.f32 %v639, %v799
        %v810 = vsub.f32 %v708, %v803
        %v811 = vsub.f32 %v710, %v807
        %v816 = vcombine.low %v808, %v809
        %v817 = vcombine.low %v810, %v811
        %v819 = vunpack.c.l.s4 1983009808
        %v820 = vunpack.c.0.s8 %v819
        %v821 = vlaneseq
        %v822 = vshrl.u32 %v821, 7
        %v823 = vsub.s32 %v820, %v822
        %v824 = vrot.slane %v816, %v823
        %v826 = vunpack.c.l.s4 1983009808
        %v827 = vunpack.c.0.s8 %v826
        %v828 = vlaneseq
        %v829 = vshrl.u32 %v828, 7
        %v830 = vsub.s32 %v827, %v829
        %v831 = vrot.slane %v817, %v830
        %v832 = vcombine.low %v824, %v831
        %834 = vst [vmem:[%s218] sm:$0xff] %v832
        %s835 = sand.u32 %s137, 1
        %s836 = scalar_lea.sflag [#allocation3], %s835
        %s837 = sand.u32 %s137, 1
        %s838 = smul.addr %s837, 8
        %s839 = scalar_lea.vmem [#allocation2], %s838
        // Predicated region
        $region41: #{net_forward.1} parent=39 // pred_check
          %p840 = pneg %p147
        $region42: #{net_forward.1} parent=39 // pred_check_branch
          %842 = sbr.rel (%p840) target = $region44
        $region43: #{net_forward.1} parent=39 // pred_region
          %s843 = smul.u32 4, %s19
          %s845 = ssub.s32 128, 128
          %846 = vsyncadd %s836, %s845
          %s847 = smul.addr %s843, 32
          %s848 = scalar_lea.hbm %s5, %s847
          %s850 = sshll.u32 %s839, 4
          %s851 = int_to_ptr.vmem [resolvable:$true] %s850
          %853 = dma.vmem_to_hbm [thread:$0]  %s851, 128, %s848, %s836
        $region44: #{net_forward.1} parent=39 // pred_fallthru
          _
      $region40: #{net_forward.1} parent=5 // pred_fallthru
        _
      %p854 = scmp.le.s32.totalorder 2, %s14
      // Predicated region
      $region45: #{net_forward.1} parent=5 // pred_check
        %p855 = pneg %p854
      $region46: #{net_forward.1} parent=5 // pred_check_branch
        %857 = sbr.rel (%p855) target = $region48
      $region47: #{net_forward.1} parent=5 // pred_region
        %s858 = ssub.s32 %s14, 2
        // Predicated region
        $region49: #{net_forward.1} parent=47 // pred_check
          %p859 = pneg %p153
        $region50: #{net_forward.1} parent=47 // pred_check_branch
          %861 = sbr.rel (%p859) target = $region52
        $region51: #{net_forward.1} parent=47 // pred_region
          %s862 = sand.u32 %s138, 1
          %s863 = scalar_lea.sflag [#allocation3], %s862
          %s864 = sand.u32 %s138, 1
          %s865 = smul.addr %s864, 8
          %s866 = scalar_lea.vmem [#allocation2], %s865
          %867 = dma.done %s863, 128
        $region52: #{net_forward.1} parent=47 // pred_fallthru
          _
      $region48: #{net_forward.1} parent=5 // pred_fallthru
        _
    $region6: #{net_forward.1} parent=1 // loop_footer
      %s18 = sadd.s32 1, %s14
    $region7: #{net_forward.1} parent=1 // loop_footer_branch
      %13 = sbr.rel target = $region3
    $region8: #{net_forward.1} parent=1 // loop_exit
      _
    %868 = vsyncpa [#allocation3], 1
    %s869 = scalar_lea.sflag [#allocation3], 1
    %870 = vsyncpa %s869, 1

</llo_original>
